<compile_context>
chip_gen: v5e
topology: v5e:2x2
jax: 0.10.0
libtpu: 0.0.40
codegen_flags: <defaults>
</compile_context>

<pallas_src>
import functools

import jax
import jax.numpy as jnp
from jax.experimental import pallas as pl
from jax.experimental.pallas import tpu as pltpu


def _batch_entropy_kernel(prob_ref, be_ref, loss_ref, *, num_models, batch_size):
    i = pl.program_id(0)

    # loss output has a constant index_map -> resident across the batch grid;
    # use it directly as the accumulator (P3 pattern).
    @pl.when(i == 0)
    def _init():
        loss_ref[...] = jnp.zeros_like(loss_ref)

    p = prob_ref[...].astype(jnp.float32)                      # (M, TB, C)

    # Numerically stable softmax over the class (lane) axis, per model & sample.
    row_max = jnp.max(p, axis=2, keepdims=True)                # (M, TB, 1)
    e = jnp.exp(p - row_max)                                   # EUP
    denom = jnp.sum(e, axis=2, keepdims=True)                  # (M, TB, 1)
    sm = e * (1.0 / denom)                                     # divide small, multiply big

    # Mean over source models (leading axis -> cheap VPU adds of M pages).
    p_bar = jnp.sum(sm, axis=0) * (1.0 / float(num_models))    # (TB, C)

    # sum_c p_bar*log(p_bar)  ==  -( p_bar * -log(p_bar) ).sum(dim=1)
    # (shares the torch module's p_bar == 0 -> NaN hazard; not guarded there either)
    be = jnp.sum(p_bar * jnp.log(p_bar), axis=1, keepdims=True)  # (TB, 1)

    be_ref[...] = be.astype(be_ref.dtype)

    partial = jnp.sum(be, axis=0, keepdims=True)               # (1, 1)
    loss_ref[...] = loss_ref[...] + partial * (1.0 / float(batch_size))


def _pick_batch_tile(b):
    for cand in (256, 128, 64, 32, 16, 8):
        if b % cand == 0:
            return cand
    return b  # small / odd batch: one full-batch block


def batch_entropy_loss(prob):
    """Returns (loss, batch_entropy) exactly like the torch module."""
    assert prob.ndim == 3, "prob must be (num_models, batch, num_classes)"
    m, b, c = prob.shape
    tb = _pick_batch_tile(b)
    grid = (b // tb,)
    prob = prob.astype(jnp.float32)

    kernel = functools.partial(_batch_entropy_kernel, num_models=m, batch_size=b)
    be, loss = pl.pallas_call(
        kernel,
        out_shape=(
            jax.ShapeDtypeStruct((b, 1), jnp.float32),   # per-sample (negative entropy)
            jax.ShapeDtypeStruct((1, 1), jnp.float32),   # scalar loss
        ),
        grid=grid,
        in_specs=[pl.BlockSpec((m, tb, c), lambda i: (0, i, 0))],
        out_specs=(
            pl.BlockSpec((tb, 1), lambda i: (i, 0)),
            pl.BlockSpec((1, 1), lambda i: (0, 0)),      # resident accumulator
        ),
        compiler_params=pltpu.CompilerParams(
            dimension_semantics=("arbitrary",)),          # sequential: loss accumulates
    )(prob)
    return loss[0, 0], be[:, 0]


def _reference(prob):
    """Pure-JAX mirror of the torch forward (for a sanity check)."""
    p_bar = jax.nn.softmax(prob, axis=2).mean(axis=0)
    be = p_bar * -jnp.log(p_bar)
    be = -be.sum(axis=1)
    return be.mean(), be


if __name__ == "__main__":
    M, B, C = 3, 24, 32    # (num_source_models, batch, num_classes) -> grid of 3 batch tiles
    key = jax.random.PRNGKey(0)
    prob = jax.random.normal(key, (M, B, C), dtype=jnp.float32)

    loss, batch_entropy = batch_entropy_loss(prob)
    loss = jax.block_until_ready(loss)
    batch_entropy = jax.block_until_ready(batch_entropy)

    ref_loss, ref_be = _reference(prob)
    assert abs(float(loss) - float(ref_loss)) < 1e-4, (float(loss), float(ref_loss))
    assert float(jnp.max(jnp.abs(batch_entropy - ref_be))) < 1e-4

    print("KERNEL_OK")
</pallas_src>

<mosaic_0001>
module attributes {stable_mosaic.version = 11 : i64} {
  func.func @_batch_entropy_kernel(%arg0: i32, %arg1: memref<3x8x32xf32, #tpu.memory_space<vmem>>, %arg2: memref<8x1xf32, #tpu.memory_space<vmem>>, %arg3: memref<1x1xf32, #tpu.memory_space<vmem>>) attributes {dimension_semantics = [#tpu.dimension_semantics<arbitrary>], iteration_bounds = array<i64: 3>, scalar_prefetch = 0 : i64, scratch_operands = 0 : i64, tpu.core_type = #tpu.core_type<tc>, window_params = [{transform_indices = @transform_0, window_bounds = array<i64: 3, 8, 32>}, {transform_indices = @transform_1, window_bounds = array<i64: 8, 1>}, {pipeline_mode = #tpu.pipeline_mode<synchronous>, transform_indices = @transform_2, window_bounds = array<i64: 1, 1>}]} {
    %c0_i32 = arith.constant 0 : i32
    %0 = arith.cmpi eq, %arg0, %c0_i32 : i32
    %1 = arith.extui %0 : i1 to i32
    %c0_i32_0 = arith.constant 0 : i32
    %2 = arith.cmpi ne, %1, %c0_i32_0 : i32
    scf.if %2 {
      %cst_16 = arith.constant 0.000000e+00 : f32
      %30 = vector.broadcast %cst_16 : f32 to vector<1x1xf32>
      %c0_17 = arith.constant 0 : index
      %c0_18 = arith.constant 0 : index
      %31 = vector.load %arg3[%c0_17, %c0_18] : memref<1x1xf32, #tpu.memory_space<vmem>>, vector<1x1xf32>
      tpu.vector_store %arg3[%c0_17, %c0_18], %30 {strides = array<i32>} : memref<1x1xf32, #tpu.memory_space<vmem>>, vector<1x1xf32>,
    } else {
    }
    %c0 = arith.constant 0 : index
    %c0_1 = arith.constant 0 : index
    %c0_2 = arith.constant 0 : index
    %3 = vector.load %arg1[%c0, %c0_1, %c0_2] : memref<3x8x32xf32, #tpu.memory_space<vmem>>, vector<3x8x32xf32>
    %cst = arith.constant dense<0xFF800000> : vector<3x8xf32>
    %4 = vector.multi_reduction <maximumf>, %3, %cst [2] : vector<3x8x32xf32> to vector<3x8xf32>
    %5 = vector.shape_cast %4 : vector<3x8xf32> to vector<3x8x1xf32>
    %6 = vector.broadcast %5 : vector<3x8x1xf32> to vector<3x8x32xf32>
    %7 = arith.subf %3, %6 : vector<3x8x32xf32>
    %8 = math.exp %7 : vector<3x8x32xf32>
    %cst_3 = arith.constant dense<0.000000e+00> : vector<3x8xf32>
    %9 = vector.multi_reduction <add>, %8, %cst_3 [2] : vector<3x8x32xf32> to vector<3x8xf32>
    %10 = vector.shape_cast %9 : vector<3x8xf32> to vector<3x8x1xf32>
    %cst_4 = arith.constant 1.000000e+00 : f32
    %11 = vector.broadcast %cst_4 : f32 to vector<3x8x1xf32>
    %12 = arith.divf %11, %10 : vector<3x8x1xf32>
    %13 = vector.broadcast %12 : vector<3x8x1xf32> to vector<3x8x32xf32>
    %14 = arith.mulf %8, %13 : vector<3x8x32xf32>
    %cst_5 = arith.constant dense<0.000000e+00> : vector<8x32xf32>
    %15 = vector.multi_reduction <add>, %14, %cst_5 [0] : vector<3x8x32xf32> to vector<8x32xf32>
    %cst_6 = arith.constant 0.333333343 : f32
    %16 = vector.broadcast %cst_6 : f32 to vector<8x32xf32>
    %17 = arith.mulf %15, %16 : vector<8x32xf32>
    %18 = math.log %17 : vector<8x32xf32>
    %19 = arith.mulf %17, %18 : vector<8x32xf32>
    %cst_7 = arith.constant dense<0.000000e+00> : vector<8xf32>
    %20 = vector.multi_reduction <add>, %19, %cst_7 [1] : vector<8x32xf32> to vector<8xf32>
    %21 = vector.shape_cast %20 : vector<8xf32> to vector<8x1xf32>
    %c0_8 = arith.constant 0 : index
    %c0_9 = arith.constant 0 : index
    %22 = vector.load %arg2[%c0_8, %c0_9] : memref<8x1xf32, #tpu.memory_space<vmem>>, vector<8x1xf32>
    tpu.vector_store %arg2[%c0_8, %c0_9], %21 {strides = array<i32>} : memref<8x1xf32, #tpu.memory_space<vmem>>, vector<8x1xf32>,
    %cst_10 = arith.constant dense<0.000000e+00> : vector<1xf32>
    %23 = vector.multi_reduction <add>, %21, %cst_10 [0] : vector<8x1xf32> to vector<1xf32>
    %24 = vector.shape_cast %23 : vector<1xf32> to vector<1x1xf32>
    %c0_11 = arith.constant 0 : index
    %c0_12 = arith.constant 0 : index
    %25 = vector.load %arg3[%c0_11, %c0_12] : memref<1x1xf32, #tpu.memory_space<vmem>>, vector<1x1xf32>
    %cst_13 = arith.constant 0.0416666679 : f32
    %26 = vector.broadcast %cst_13 : f32 to vector<1x1xf32>
    %27 = arith.mulf %24, %26 : vector<1x1xf32>
    %28 = arith.addf %25, %27 : vector<1x1xf32>
    %c0_14 = arith.constant 0 : index
    %c0_15 = arith.constant 0 : index
    %29 = vector.load %arg3[%c0_14, %c0_15] : memref<1x1xf32, #tpu.memory_space<vmem>>, vector<1x1xf32>
    tpu.vector_store %arg3[%c0_14, %c0_15], %28 {strides = array<i32>} : memref<1x1xf32, #tpu.memory_space<vmem>>, vector<1x1xf32>,
    return
  }
  func.func @transform_0(%arg0: i32) -> (i32, i32, i32) {
    %c0_i32 = arith.constant 0 : i32
    %c0_i32_0 = arith.constant 0 : i32
    %c0_i32_1 = arith.constant 0 : i32
    return %c0_i32, %arg0, %c0_i32_0 : i32, i32, i32
  }
  func.func @transform_1(%arg0: i32) -> (i32, i32) {
    %c0_i32 = arith.constant 0 : i32
    %c0_i32_0 = arith.constant 0 : i32
    return %arg0, %c0_i32 : i32, i32
  }
  func.func @transform_2(%arg0: i32) -> (i32, i32) {
    %c0_i32 = arith.constant 0 : i32
    %c0_i32_0 = arith.constant 0 : i32
    %c0_i32_1 = arith.constant 0 : i32
    return %c0_i32, %c0_i32_0 : i32, i32
  }
}

</mosaic_0001>

<llo_original>
// kernel: tpu_custom_call.1
$region0: #{tpu_custom_call.1}
  #allocation0 [shape = 'u32[]', space=smem, size = 0x4, offset = 0x4, fixed_abs, tag = 'smem constant byte address 0x4 - core index']
  #allocation1 [shape = 'u32[72,128]{1,0:T(1,128)}', space=vmem, size = 0x9000, scoped, tag = 'internal scratch']
  %s0 = inlined_call_operand.hbm [shape: f32[3,24,32], index: 0, kind: input, shape index: {}]
  %s1 = inlined_call_operand.vmem [shape: f32[24,1], index: 1, kind: output, shape index: {0}]
  %s2 = inlined_call_operand.hbm [shape: f32[1,1], index: 2, kind: output, shape index: {1}]
  %3 = xla_tuple %s1, %s2
  %s4 = sld [smem:[#allocation0]]
  $region53: #{tpu_custom_call.1} parent=0
    _
  %s6 = ssub.s32 1, %s4
  %s7 = scalar_select 0, %s6, %s4
  $region1: #{tpu_custom_call.1} parent=0
    #allocation2 [shape = 'u8[24576]{0}', space=vmem, size = 0x6000, scoped, tag = 'input window, operand 0']
    #allocation3 [shape = 's32[2]{0}', space=sflag, size = 0x8, scoped, tag = 'scoped memory for tpu_custom_call.1']
    #allocation4 [shape = 's32[2]{0}', space=sflag, size = 0x8, scoped, tag = 'scoped memory for tpu_custom_call.1']
    #allocation5 [shape = 'u8[512]{0}', space=vmem, size = 0x400, scoped, tag = 'output window, operand 1, single buffered']
    %8 = vsyncpa [#allocation3], 0
    %s9 = scalar_lea.sflag [#allocation3], 1
    %10 = vsyncpa %s9, 0
    %11 = vsyncpa [#allocation4], 0
    loop: start=0, step=1, limit=5
    $region2: #{tpu_custom_call.1} parent=1 // loop_pre_header
      _
    $region3: #{tpu_custom_call.1} parent=1 // loop_header
      %s13 = sphi 0, %s17
      %p14 = scmp.ge.s32.totalorder %s13, 5
      %s23 = sphi 0, %s25
      %s26 = sphi 0, %s23
      %s27 = sphi 0, %s26
      %s43 = sphi 0, %s27
      %s49 = sphi 0, %s51
      %s52 = sphi 0, %s49
      %s53 = sphi 0, %s52
      %s69 = sphi 0, %s53
      %s73 = sphi 0, %s73
      %s75 = sphi 0, %s73
      %s76 = sphi 0, %s75
      %s90 = sphi 0, %s76
    $region4: #{tpu_custom_call.1} parent=1 // loop_header_branch
      %16 = sbr.rel (%p14) target = $region8
    $region5: #{tpu_custom_call.1} parent=1 // loop_body
      %s18 = ssub.s32 %s13, 1
      %s19 = ssub.s32 %s13, 2
      %s20 = sadd.s32 %s13, 1
      %s21 = ssub.s32 %s13, %s20
      %p22 = scmp.eq.s32.totalorder %s21, 0
      %s24 = sadd.s32 %s23, 1
      %s25 = scalar_select %p22, %s23, %s24
      %p28 = pneg %p22
      %p29 = scmp.eq.s32.totalorder %s13, 2
      %p30 = por %p28, %p29
      %p31 = scmp.ne.s32.totalorder %s23, %s26
      %p32 = scmp.eq.s32.totalorder %s13, 0
      %p33 = por %p31, %p32
      %p34 = scmp.ne.s32.totalorder %s23, %s26
      %p35 = scmp.eq.s32.totalorder %s18, 2
      %p36 = por %p34, %p35
      %p37 = scmp.ne.s32.totalorder %s26, %s27
      %p38 = scmp.eq.s32.totalorder %s18, 0
      %p39 = por %p37, %p38
      %p40 = scmp.ne.s32.totalorder %s26, %s27
      %p41 = scmp.eq.s32.totalorder %s19, 2
      %p42 = por %p40, %p41
      %p44 = scmp.ne.s32.totalorder %s27, %s43
      %p45 = scmp.eq.s32.totalorder %s19, 0
      %p46 = por %p44, %p45
      %s47 = ssub.s32 %s13, %s20
      %p48 = scmp.eq.s32.totalorder %s47, 0
      %s50 = sadd.s32 %s49, 1
      %s51 = scalar_select %p48, %s49, %s50
      %p54 = pneg %p48
      %p55 = scmp.eq.s32.totalorder %s13, 2
      %p56 = por %p54, %p55
      %p57 = scmp.ne.s32.totalorder %s49, %s52
      %p58 = scmp.eq.s32.totalorder %s13, 0
      %p59 = por %p57, %p58
      %p60 = scmp.ne.s32.totalorder %s49, %s52
      %p61 = scmp.eq.s32.totalorder %s18, 2
      %p62 = por %p60, %p61
      %p63 = scmp.ne.s32.totalorder %s52, %s53
      %p64 = scmp.eq.s32.totalorder %s18, 0
      %p65 = por %p63, %p64
      %p66 = scmp.ne.s32.totalorder %s52, %s53
      %p67 = scmp.eq.s32.totalorder %s19, 2
      %p68 = por %p66, %p67
      %p70 = scmp.ne.s32.totalorder %s53, %s69
      %p71 = scmp.eq.s32.totalorder %s19, 0
      %p72 = por %p70, %p71
      %s74 = sadd.s32 %s73, 1
      %p77 = scmp.eq.s32.totalorder %s13, 2
      %p78 = scmp.ne.s32.totalorder %s73, %s75
      %p79 = scmp.eq.s32.totalorder %s13, 0
      %p80 = por %p78, %p79
      %p81 = scmp.ne.s32.totalorder %s73, %s75
      %p82 = scmp.eq.s32.totalorder %s18, 2
      %p83 = por %p81, %p82
      %p84 = scmp.ne.s32.totalorder %s75, %s76
      %p85 = scmp.eq.s32.totalorder %s18, 0
      %p86 = por %p84, %p85
      %p87 = scmp.ne.s32.totalorder %s75, %s76
      %p88 = scmp.eq.s32.totalorder %s19, 2
      %p89 = por %p87, %p88
      %p91 = scmp.ne.s32.totalorder %s76, %s90
      %p92 = scmp.eq.s32.totalorder %s19, 0
      %p93 = por %p91, %p92
      %p94 = scmp.le.s32.totalorder 1, %s13
      %p95 = scmp.lt.s32.totalorder %s13, 4
      %p96 = pnand %p94, %p95
      %p97 = pneg %p96
      // Predicated region
      $region9: #{tpu_custom_call.1} parent=5 // pred_check
        _
      $region10: #{tpu_custom_call.1} parent=5 // pred_check_branch
        %99 = sbr.rel (%p96) target = $region12
      $region11: #{tpu_custom_call.1} parent=5 // pred_region
        %s100 = ssub.s32 %s13, 1
      $region12: #{tpu_custom_call.1} parent=5 // pred_fallthru
        _
      %p101 = scmp.lt.s32.totalorder %s13, 3
      // Predicated region
      $region13: #{tpu_custom_call.1} parent=5 // pred_check
        %p102 = pneg %p101
      $region14: #{tpu_custom_call.1} parent=5 // pred_check_branch
        %104 = sbr.rel (%p102) target = $region16
      $region15: #{tpu_custom_call.1} parent=5 // pred_region
        // Predicated region
        $region17: #{tpu_custom_call.1} parent=15 // pred_check
          %p105 = pneg %p33
        $region18: #{tpu_custom_call.1} parent=15 // pred_check_branch
          %107 = sbr.rel (%p105) target = $region20
        $region19: #{tpu_custom_call.1} parent=15 // pred_region
          %s108 = sand.u32 %s23, 1
          %s109 = scalar_lea.sflag [#allocation3], %s108
          %s110 = sand.u32 %s23, 1
          %s111 = smul.addr %s110, 24
          %s112 = scalar_lea.vmem [#allocation2], %s111
          %114 = vsyncadd %s109, 0
          %s115 = smul.addr %s13, 8
          %s116 = scalar_lea.hbm %s0, %s115
          %s117 = sshll.u32 %s116, 4
          %s118 = int_to_ptr.hbm [resolvable:$true] %s117
          %s119 = sshll.u32 %s112, 4
          %s120 = int_to_ptr.vmem [resolvable:$true] %s119
          %125 = dma.hbm_to_vmem [thread:$0]  %s118, 384, %s120, %s109, 384, 128, 8
        $region20: #{tpu_custom_call.1} parent=15 // pred_fallthru
          _
      $region16: #{tpu_custom_call.1} parent=5 // pred_fallthru
        _
      %p126 = scmp.le.s32.totalorder 1, %s13
      %p127 = scmp.lt.s32.totalorder %s13, 4
      %p128 = pnand %p126, %p127
      %p129 = pneg %p128
      // Predicated region
      $region21: #{tpu_custom_call.1} parent=5 // pred_check
        _
      $region22: #{tpu_custom_call.1} parent=5 // pred_check_branch
        %131 = sbr.rel (%p128) target = $region24
      $region23: #{tpu_custom_call.1} parent=5 // pred_region
        %s132 = ssub.s32 %s13, 1
        %s133 = sand.u32 %s26, 1
        %s134 = scalar_lea.sflag [#allocation3], %s133
        %s135 = sand.u32 %s26, 1
        %s136 = smul.addr %s135, 24
        %s137 = scalar_lea.vmem [#allocation2], %s136
        // Predicated region
        $region25: #{tpu_custom_call.1} parent=23 // pred_check
          %p138 = pneg %p39
        $region26: #{tpu_custom_call.1} parent=23 // pred_check_branch
          %140 = sbr.rel (%p138) target = $region28
        $region27: #{tpu_custom_call.1} parent=23 // pred_region
          %142 = dma.done %s134, 384
        $region28: #{tpu_custom_call.1} parent=23 // pred_fallthru
          _
        %s143 = sand.u32 %s26, 1
        %s144 = scalar_lea.sflag [#allocation3], %s143
        %s145 = sand.u32 %s26, 1
        %s146 = smul.addr %s145, 24
        %s147 = scalar_lea.vmem [#allocation2], %s146
        %p148 = pneg %p39
        %p149 = pneg %p36
        %p150 = pneg %p65
        %p151 = pneg %p62
        %p152 = scmp.lt.s32.totalorder %s18, 2
        %s153 = scalar_select %p152, %s18, 2
        %s154 = smul.addr %s153, 8
        %s155 = scalar_lea.vmem %s1, %s154
        %p156 = pneg %p86
        %p157 = pneg %p83
        %p158 = scmp.lt.s32.totalorder %s18, 2
        %s159 = scalar_select %p158, %s18, 2
        %s160 = smul.addr %s159, 8
        %s161 = scalar_lea.vmem %s1, %s160
        %p162 = scmp.eq.s32.totalorder %s18, 0
        // Predicated region
        $region29: #{tpu_custom_call.1} parent=23 // pred_check
          %p163 = pneg %p162
        $region30: #{tpu_custom_call.1} parent=23 // pred_check_branch
          %165 = sbr.rel (%p163) target = $region32
        $region31: #{tpu_custom_call.1} parent=23 // pred_region
          %vm166 = vcmask 0
          %167 = vst.msk [vmem:[#allocation5] sm:$0x1] %vm166, 0.0
        $region32: #{tpu_custom_call.1} parent=23 // pred_fallthru
          _
        %v168 = vld [vmem:[%s137] sm:$0xff]
        %v169 = vld [vmem:[%s137 + $0x8] sm:$0xff]
        %v170 = vld [vmem:[%s137 + $0x10] sm:$0xff]
        %vm171 = vcmask 261120
        %v172 = vsel %vm171, %v168, -inf
        %173 = vmax.xlane.f32.xlu0 %v172
        %v174 = vpop.xlane.xlu0 %173
        %v175 = vsel %vm171, %v169, -inf
        %176 = vmax.xlane.f32.xlu0 %v175
        %v177 = vpop.xlane.xlu0 %176
        %v178 = vsel %vm171, %v170, -inf
        %179 = vmax.xlane.f32.xlu0 %v178
        %v180 = vpop.xlane.xlu0 %179
        %v181 = vsub.f32 %v168, %v174
        %v182 = vsub.f32 %v169, %v177
        %v183 = vsub.f32 %v170, %v180
        %v184 = vmul.f32 %v181, 1.442695
        %v185 = vpow.pop %v184
        %v186 = vmul.f32 %v182, 1.442695
        %v187 = vpow.pop %v186
        %v188 = vmul.f32 %v183, 1.442695
        %v189 = vpow.pop %v188
        %v190 = vsel %vm171, %v185, 0.0
        %191 = vadd.xlane.f32.xlu0 %v190
        %v192 = vpop.xlane.xlu0 %191
        %v193 = vsel %vm171, %v187, 0.0
        %194 = vadd.xlane.f32.xlu0 %v193
        %v195 = vpop.xlane.xlu0 %194
        %v196 = vsel %vm171, %v189, 0.0
        %197 = vadd.xlane.f32.xlu0 %v196
        %v198 = vpop.xlane.xlu0 %197
        %v199 = vrcp.pop %v192
        %v200 = vmul.f32 %v192, %v199
        %v201 = vsub.f32 1.0, %v200
        %v202 = vmul.f32 %v199, %v201
        %v203 = vadd.f32 %v199, %v202
        %vm204 = vweird.f32 %v192
        %vm205 = vweird.f32 %v199
        %vm206 = vmor %vm204, %vm205
        %v207 = vsel %vm206, %v199, %v203
        %v208 = vand.u32 2147483647, %v192
        %vm209 = vcmp.eq.f32.partialorder %v208, 8.507059e+37
        %v210 = vand.u32 %v192, 2147483648
        %v211 = vor.u32 1.1754944e-38, %v210
        %v212 = vsel %vm209, %v211, %v207
        %v213 = vmul.f32 1.0, %v212
        %v214 = vrcp.pop %v195
        %v215 = vmul.f32 %v195, %v214
        %v216 = vsub.f32 1.0, %v215
        %v217 = vmul.f32 %v214, %v216
        %v218 = vadd.f32 %v214, %v217
        %vm219 = vweird.f32 %v195
        %vm220 = vweird.f32 %v214
        %vm221 = vmor %vm219, %vm220
        %v222 = vsel %vm221, %v214, %v218
        %v223 = vand.u32 2147483647, %v195
        %vm224 = vcmp.eq.f32.partialorder %v223, 8.507059e+37
        %v225 = vand.u32 %v195, 2147483648
        %v226 = vor.u32 1.1754944e-38, %v225
        %v227 = vsel %vm224, %v226, %v222
        %v228 = vmul.f32 1.0, %v227
        %v229 = vrcp.pop %v198
        %v230 = vmul.f32 %v198, %v229
        %v231 = vsub.f32 1.0, %v230
        %v232 = vmul.f32 %v229, %v231
        %v233 = vadd.f32 %v229, %v232
        %vm234 = vweird.f32 %v198
        %vm235 = vweird.f32 %v229
        %vm236 = vmor %vm234, %vm235
        %v237 = vsel %vm236, %v229, %v233
        %v238 = vand.u32 2147483647, %v198
        %vm239 = vcmp.eq.f32.partialorder %v238, 8.507059e+37
        %v240 = vand.u32 %v198, 2147483648
        %v241 = vor.u32 1.1754944e-38, %v240
        %v242 = vsel %vm239, %v241, %v237
        %v243 = vmul.f32 1.0, %v242
        %v244 = vmul.f32 %v185, %v213
        %v245 = vmul.f32 %v187, %v228
        %v246 = vmul.f32 %v189, %v243
        %v247 = vsel %vm171, %v244, 0.0
        %v248 = vsel %vm171, %v245, 0.0
        %v249 = vadd.f32 %v247, %v248
        %v250 = vsel %vm171, %v246, 0.0
        %v251 = vadd.f32 %v249, %v250
        %v252 = vmul.f32 %v251, 0.33333334
        %v253 = vlog2.pop %v252
        %v254 = vmul.f32 %v253, 0.6931472
        %v255 = vmul.f32 %v252, %v254
        %v256 = vsel %vm171, %v255, 0.0
        %257 = vadd.xlane.f32.xlu0 %v256
        %v258 = vpop.xlane.xlu0 %257
        %vm259 = vcmask 7168
        %260 = vst.msk [vmem:[%s161] sm:$0xff] %vm259, %v258
        %v261 = vrot.slane %v258, 4
        %v262 = vadd.f32 %v258, %v261
        %v263 = vrot.slane %v262, 2
        %v264 = vadd.f32 %v262, %v263
        %v265 = vrot.slane %v264, 1
        %v266 = vadd.f32 %v264, %v265
        %v267 = vld [vmem:[#allocation5] sm:$0x1]
        %v268 = vmul.f32 %v266, 0.041666668
        %v269 = vadd.f32 %v267, %v268
        %vm270 = vcmask 0
        %271 = vst.msk [vmem:[#allocation5] sm:$0x1] %vm270, %v269
        %p272 = scmp.lt.s32.totalorder %s18, 2
        %s273 = scalar_select %p272, %s18, 2
        %s274 = smul.addr %s273, 8
        %s275 = scalar_lea.vmem %s1, %s274
        // Predicated region
        $region33: #{tpu_custom_call.1} parent=23 // pred_check
          %p276 = pneg %p62
        $region34: #{tpu_custom_call.1} parent=23 // pred_check_branch
          %278 = sbr.rel (%p276) target = $region36
        $region35: #{tpu_custom_call.1} parent=23 // pred_region
          _
        $region36: #{tpu_custom_call.1} parent=23 // pred_fallthru
          _
        // Predicated region
        $region37: #{tpu_custom_call.1} parent=23 // pred_check
          %p279 = pneg %p83
        $region38: #{tpu_custom_call.1} parent=23 // pred_check_branch
          %281 = sbr.rel (%p279) target = $region40
        $region39: #{tpu_custom_call.1} parent=23 // pred_region
          %283 = vsyncadd [#allocation4], 0
          %s285 = sshll.u32 [#allocation5], 4
          %s286 = int_to_ptr.vmem [resolvable:$true] %s285
          %s287 = sshll.u32 %s2, 4
          %s288 = int_to_ptr.hbm [resolvable:$true] %s287
          %290 = dma.vmem_to_hbm [thread:$0]  %s286, 16, %s288, [#allocation4]
        $region40: #{tpu_custom_call.1} parent=23 // pred_fallthru
          _
        // Predicated region
        $region41: #{tpu_custom_call.1} parent=23 // pred_check
          %p291 = pneg %p83
        $region42: #{tpu_custom_call.1} parent=23 // pred_check_branch
          %293 = sbr.rel (%p291) target = $region44
        $region43: #{tpu_custom_call.1} parent=23 // pred_region
          %295 = dma.done [#allocation4], 16
        $region44: #{tpu_custom_call.1} parent=23 // pred_fallthru
          _
      $region24: #{tpu_custom_call.1} parent=5 // pred_fallthru
        _
      %p296 = scmp.le.s32.totalorder 2, %s13
      // Predicated region
      $region45: #{tpu_custom_call.1} parent=5 // pred_check
        %p297 = pneg %p296
      $region46: #{tpu_custom_call.1} parent=5 // pred_check_branch
        %299 = sbr.rel (%p297) target = $region48
      $region47: #{tpu_custom_call.1} parent=5 // pred_region
        %s300 = ssub.s32 %s13, 2
        // Predicated region
        $region49: #{tpu_custom_call.1} parent=47 // pred_check
          %p301 = pneg %p68
        $region50: #{tpu_custom_call.1} parent=47 // pred_check_branch
          %303 = sbr.rel (%p301) target = $region52
        $region51: #{tpu_custom_call.1} parent=47 // pred_region
          %p304 = scmp.lt.s32.totalorder %s19, 2
          %s305 = scalar_select %p304, %s19, 2
          %s306 = smul.addr %s305, 8
          %s307 = scalar_lea.vmem %s1, %s306
        $region52: #{tpu_custom_call.1} parent=47 // pred_fallthru
          _
      $region48: #{tpu_custom_call.1} parent=5 // pred_fallthru
        _
    $region6: #{tpu_custom_call.1} parent=1 // loop_footer
      %s17 = sadd.s32 1, %s13
    $region7: #{tpu_custom_call.1} parent=1 // loop_footer_branch
      %12 = sbr.rel target = $region3
    $region8: #{tpu_custom_call.1} parent=1 // loop_exit
      _
    %308 = vsyncpa [#allocation3], 1
    %s309 = scalar_lea.sflag [#allocation3], 1
    %310 = vsyncpa %s309, 1
    %311 = vsyncpa [#allocation4], 1
    %s312 = scalar_lea.sflag [#allocation4], 1
    %313 = vsyncpa %s312, 1

</llo_original>
